<compile_context>
chip_gen: v6e
topology: v6e:2x2x1
jax: 0.10.0
libtpu: 0.0.40
codegen_flags: <defaults>
</compile_context>

<pallas_src>
import functools

import jax
import jax.numpy as jnp
from jax import lax
from jax.experimental import pallas as pl
from jax.experimental.pallas import tpu as pltpu


# ---------------------------------------------------------------------------
# Helpers
# ---------------------------------------------------------------------------

_TM_TARGET = 512      # 256-aligned targets -> full MXU passes on v6e/v7x
_TN_TARGET = 1024
_TK_TARGET = 2048


def _round_up(a: int, b: int) -> int:
    return ((a + b - 1) // b) * b


def _vmem_limit_bytes() -> int:
    """Generation-aware scoped-VMEM limit."""
    cap = None
    try:
        cap = int(pltpu.get_tpu_info().vmem_capacity_bytes)
    except Exception:
        cap = None
    if cap is None:
        kind = ""
        try:
            kind = jax.devices()[0].device_kind.lower()
        except Exception:
            pass
        cap = (64 << 20) if "v7" in kind else (128 << 20)
    if cap <= (64 << 20):
        return 48 << 20    # v7x: 64 MiB physical -> leave compiler headroom
    return 100 << 20       # v5e/v6e: 128 MiB physical


def _choose_nk_tiles(N: int, K: int, vmem_limit: int):
    """Pick (tn, tk): as large as possible within ~75% of the VMEM limit."""
    budget = (vmem_limit * 3) // 4
    tn, tk = _TN_TARGET, _TK_TARGET

    def vmem_use(tm, tn_, tk_):
        # double-buffered x / w / bias input tiles + double-buffered f32 output
        return 2 * (tm * tk_ + tn_ * tk_ + tn_) * 4 + 2 * (tm * tn_) * 4

    while vmem_use(_TM_TARGET, tn, tk) > budget:
        if tk > 512:
            tk //= 2
        elif tn > 256:
            tn //= 2
        else:
            break

    # Never pad beyond what the problem needs ((8,128)-legal, lane-dense).
    tn = min(tn, _round_up(N, 128))
    tk = min(tk, _round_up(K, 128))
    return tn, tk


# ---------------------------------------------------------------------------
# Kernel
# ---------------------------------------------------------------------------

def _linear_kernel(x_ref, w_ref, b_ref, o_ref):
    # x_ref: [tm, tk], w_ref: [tn, tk], b_ref: [1, tn], o_ref: [tm, tn] (f32).
    # o_ref's block index is k-invariant, so it stays resident across the K
    # axis and serves directly as the accumulator (no scratch, no epilogue).
    @pl.when(pl.program_id(2) == 0)
    def _init():
        # Seed the resident output tile with the broadcast bias.
        o_ref[...] = jnp.broadcast_to(b_ref[...], o_ref.shape)

    # Contract K of x with K of weight (weight stays [out, in]; no transpose).
    o_ref[...] += lax.dot_general(
        x_ref[...],
        w_ref[...],
        dimension_numbers=(((1,), (1,)), ((), ())),
        preferred_element_type=jnp.float32,
    )


@functools.partial(jax.jit, static_argnames=("tm", "tn", "tk", "vmem_limit"))
def _pallas_linear(x, weight, bias, *, tm, tn, tk, vmem_limit):
    """x: [Mp, Kp], weight: [Np, Kp], bias: [1, Np] (all tile-aligned, f32)."""
    Mp, Kp = x.shape
    Np = weight.shape[0]
    grid = (Mp // tm, Np // tn, Kp // tk)

    return pl.pallas_call(
        _linear_kernel,
        out_shape=jax.ShapeDtypeStruct((Mp, Np), jnp.float32),
        grid_spec=pltpu.PrefetchScalarGridSpec(
            num_scalar_prefetch=0,
            grid=grid,
            in_specs=[
                pl.BlockSpec((tm, tk), lambda i, j, k: (i, k)),   # x tile
                pl.BlockSpec((tn, tk), lambda i, j, k: (j, k)),   # weight tile
                pl.BlockSpec((1, tn), lambda i, j, k: (0, j)),    # bias row
            ],
            out_specs=pl.BlockSpec((tm, tn), lambda i, j, k: (i, j)),
        ),
        compiler_params=pltpu.CompilerParams(
            # K is the reduction axis -> "arbitrary"; M/N shard across the two
            # TensorCores on v7x (harmless on single-TC v5e/v6e).
            dimension_semantics=("parallel", "parallel", "arbitrary"),
            vmem_limit_bytes=vmem_limit,
        ),
        cost_estimate=pl.CostEstimate(
            flops=2 * Mp * Np * Kp,
            transcendentals=0,
            bytes_accessed=4 * (Mp * Kp + Np * Kp + Mp * Np + Np),
        ),
    )(x, weight, bias)


# ---------------------------------------------------------------------------
# Module wrapper
# ---------------------------------------------------------------------------

class MyLinear:
    """Pallas analogue of the PyTorch My_Linear module: y = x @ W.T + b."""

    def __init__(self, weight, bias=None, *, name=None):
        weight = jnp.asarray(weight, jnp.float32)
        assert weight.ndim == 2
        N, K = weight.shape
        if bias is None:
            bias = jnp.zeros((N,), jnp.float32)
        bias = jnp.asarray(bias, jnp.float32)

        self.name = name
        self.out_features, self.in_features = N, K
        self.weight, self.bias = weight, bias

        # --- Hoisted out of the per-call hot path (one-time setup). ---------
        self._vmem_limit = _vmem_limit_bytes()
        tn, tk = _choose_nk_tiles(N, K, self._vmem_limit)
        self._tn, self._tk = tn, tk
        Np, Kp = _round_up(N, tn), _round_up(K, tk)
        self._Np, self._Kp = Np, Kp
        w_p = weight if (Np, Kp) == (N, K) else jnp.pad(
            weight, ((0, Np - N), (0, Kp - K)))
        b_p = bias if Np == N else jnp.pad(bias, (0, Np - N))
        self._w_padded = w_p
        self._b_padded = b_p.reshape(1, Np)

    def __call__(self, x):
        x = jnp.asarray(x, jnp.float32)
        orig_shape = x.shape
        x2 = x.reshape(-1, self.in_features)       # nn.Linear: any leading dims
        M = x2.shape[0]
        N, K = self.out_features, self.in_features

        # Fast path: tiny problems are faster in plain XLA than a padded kernel.
        if N < 128 or K < 128 or M * N * K < (1 << 20):
            y = x2 @ self.weight.T + self.bias
            return y.reshape(*orig_shape[:-1], N)

        # M tile (batch-dependent, chosen per call; cheap -- no param repack).
        tm = min(_TM_TARGET, _round_up(M, 8))
        n_blocks = (_round_up(M, tm) // tm) * (self._Np // self._tn)
        if n_blocks < 2 and M >= 16:
            # Guarantee >= 2 blocks on a parallel axis (v7x has 2 TensorCores).
            tm = _round_up((M + 1) // 2, 8)
        Mp = _round_up(M, tm)

        xp = x2 if (Mp, self._Kp) == (M, K) else jnp.pad(
            x2, ((0, Mp - M), (0, self._Kp - K)))

        y = _pallas_linear(
            xp, self._w_padded, self._b_padded,
            tm=tm, tn=self._tn, tk=self._tk, vmem_limit=self._vmem_limit)
        y = y[:M, :N]
        return y.reshape(*orig_shape[:-1], N)


def my_linear(x, weight, bias=None):
    """One-shot functional form. Prefer MyLinear for repeated calls (it hoists
    the weight/bias padding out of the hot path)."""
    return MyLinear(weight, bias)(x)


# ---------------------------------------------------------------------------
# Demo / self-check
# ---------------------------------------------------------------------------

if __name__ == "__main__":
    # --- Case 1: module-sized small problem (uses the XLA fast path). -------
    k_x, k_w, k_b = jax.random.split(jax.random.PRNGKey(0), 3)
    batch, in_features, out_features = 8, 32, 16
    bound = 1.0 / (in_features ** 0.5)
    w_small = jax.random.uniform(k_w, (out_features, in_features), jnp.float32,
                                 minval=-bound, maxval=bound)
    b_small = jax.random.uniform(k_b, (out_features,), jnp.float32,
                                 minval=-bound, maxval=bound)
    x_small = jax.random.normal(k_x, (batch, in_features), jnp.float32)

    lin_small = MyLinear(w_small, b_small, name="small")
    y_small = jax.block_until_ready(lin_small(x_small))
    ref_small = x_small @ w_small.T + b_small
    assert y_small.shape == (batch, out_features)
    assert jnp.allclose(y_small, ref_small, atol=1e-5, rtol=1e-5)

    # --- Case 2: exercises the Pallas kernel (unaligned M/N/K -> padding). --
    k_x2, k_w2, k_b2 = jax.random.split(jax.random.PRNGKey(0), 3)
    batch2, in2, out2 = 136, 384, 320            # deliberately not tile-aligned
    bound2 = 1.0 / (in2 ** 0.5)
    w_big = jax.random.uniform(k_w2, (out2, in2), jnp.float32,
                               minval=-bound2, maxval=bound2)
    b_big = jax.random.uniform(k_b2, (out2,), jnp.float32,
                               minval=-bound2, maxval=bound2)
    x_big = jax.random.normal(k_x2, (batch2, in2), jnp.float32)

    lin_big = MyLinear(w_big, b_big, name="big")
    y_big = jax.block_until_ready(lin_big(x_big))
    ref_big = x_big @ w_big.T + b_big
    assert y_big.shape == (batch2, out2)
    assert jnp.allclose(y_big, ref_big, atol=1e-4, rtol=1e-4)

    print("KERNEL_OK")
</pallas_src>

<mosaic_0001>
module attributes {stable_mosaic.version = 11 : i64} {
  func.func @_linear_kernel(%arg0: i32, %arg1: i32, %arg2: i32, %arg3: memref<72x384xf32, #tpu.memory_space<vmem>>, %arg4: memref<384x384xf32, #tpu.memory_space<vmem>>, %arg5: memref<1x384xf32, #tpu.memory_space<vmem>>, %arg6: memref<72x384xf32, #tpu.memory_space<vmem>>) attributes {dimension_semantics = [#tpu.dimension_semantics<parallel>, #tpu.dimension_semantics<parallel>, #tpu.dimension_semantics<arbitrary>], iteration_bounds = array<i64: 2, 1, 1>, scalar_prefetch = 0 : i64, scratch_operands = 0 : i64, tpu.core_type = #tpu.core_type<tc>, window_params = [{transform_indices = @transform_0, window_bounds = array<i64: 72, 384>}, {transform_indices = @transform_1, window_bounds = array<i64: 384, 384>}, {transform_indices = @transform_2, window_bounds = array<i64: 1, 384>}, {transform_indices = @transform_3, window_bounds = array<i64: 72, 384>}]} {
    %c0_i32 = arith.constant 0 : i32
    %0 = arith.cmpi eq, %arg2, %c0_i32 : i32
    %1 = arith.extui %0 : i1 to i32
    %c0_i32_0 = arith.constant 0 : i32
    %2 = arith.cmpi ne, %1, %c0_i32_0 : i32
    scf.if %2 {
      %c0_8 = arith.constant 0 : index
      %c0_9 = arith.constant 0 : index
      %9 = vector.load %arg5[%c0_8, %c0_9] : memref<1x384xf32, #tpu.memory_space<vmem>>, vector<1x384xf32>
      %10 = vector.shape_cast %9 : vector<1x384xf32> to vector<1x384xf32>
      %11 = vector.broadcast %10 : vector<1x384xf32> to vector<72x384xf32>
      %c0_10 = arith.constant 0 : index
      %c0_11 = arith.constant 0 : index
      %12 = vector.load %arg6[%c0_10, %c0_11] : memref<72x384xf32, #tpu.memory_space<vmem>>, vector<72x384xf32>
      tpu.vector_store %arg6[%c0_10, %c0_11], %11 {strides = array<i32>} : memref<72x384xf32, #tpu.memory_space<vmem>>, vector<72x384xf32>,
    } else {
    }
    %c0 = arith.constant 0 : index
    %c0_1 = arith.constant 0 : index
    %3 = vector.load %arg6[%c0, %c0_1] : memref<72x384xf32, #tpu.memory_space<vmem>>, vector<72x384xf32>
    %c0_2 = arith.constant 0 : index
    %c0_3 = arith.constant 0 : index
    %4 = vector.load %arg3[%c0_2, %c0_3] : memref<72x384xf32, #tpu.memory_space<vmem>>, vector<72x384xf32>
    %c0_4 = arith.constant 0 : index
    %c0_5 = arith.constant 0 : index
    %5 = vector.load %arg4[%c0_4, %c0_5] : memref<384x384xf32, #tpu.memory_space<vmem>>, vector<384x384xf32>
    %cst = arith.constant dense<0.000000e+00> : vector<72x384xf32>
    %6 = tpu.matmul %4, %5, %cst {dimension_numbers = #tpu.dot_dimension_numbers<[1], [1], [0], [0], [0, 0, 1, 0], [], []>} : vector<72x384xf32>, vector<384x384xf32>, vector<72x384xf32> -> vector<72x384xf32>
    %7 = arith.addf %3, %6 : vector<72x384xf32>
    %c0_6 = arith.constant 0 : index
    %c0_7 = arith.constant 0 : index
    %8 = vector.load %arg6[%c0_6, %c0_7] : memref<72x384xf32, #tpu.memory_space<vmem>>, vector<72x384xf32>
    tpu.vector_store %arg6[%c0_6, %c0_7], %7 {strides = array<i32>} : memref<72x384xf32, #tpu.memory_space<vmem>>, vector<72x384xf32>,
    return
  }
  func.func @transform_0(%arg0: i32, %arg1: i32, %arg2: i32) -> (i32, i32) {
    %c0_i32 = arith.constant 0 : i32
    return %arg0, %arg2 : i32, i32
  }
  func.func @transform_1(%arg0: i32, %arg1: i32, %arg2: i32) -> (i32, i32) {
    %c0_i32 = arith.constant 0 : i32
    return %arg1, %arg2 : i32, i32
  }
  func.func @transform_2(%arg0: i32, %arg1: i32, %arg2: i32) -> (i32, i32) {
    %c0_i32 = arith.constant 0 : i32
    %c0_i32_0 = arith.constant 0 : i32
    return %c0_i32, %arg1 : i32, i32
  }
  func.func @transform_3(%arg0: i32, %arg1: i32, %arg2: i32) -> (i32, i32) {
    %c0_i32 = arith.constant 0 : i32
    return %arg0, %arg1 : i32, i32
  }
}

</mosaic_0001>

<llo_original>
// kernel: _pallas_linear.1
$region0: #{_pallas_linear.1}
  #allocation0 [shape = 'u32[]', space=smem, size = 0x4, offset = 0x4, fixed_abs, tag = 'smem constant byte address 0x4 - core index']
  #allocation1 [shape = 'u32[144,128]{1,0:T(1,128)}', space=vmem, size = 0x12000, scoped, tag = 'internal scratch']
  %s0 = inlined_call_operand.hbm [shape: f32[144,384], index: 0, kind: input, shape index: {}]
  %s1 = inlined_call_operand.hbm [shape: f32[384,384], index: 1, kind: input, shape index: {}]
  %s2 = inlined_call_operand.vmem [shape: f32[1,384], index: 2, kind: input, shape index: {}]
  %s3 = inlined_call_operand.hbm [shape: f32[144,384], index: 3, kind: output, shape index: {}]
  %s4 = sld [smem:[#allocation0]]
  $region57: #{_pallas_linear.1} parent=0
    _
  %s6 = ssub.s32 1, %s4
  %s7 = scalar_select 0, %s6, %s4
  $region1: #{_pallas_linear.1} parent=0
    #allocation2 [shape = 'u8[221184]{0}', space=vmem, size = 0x36000, scoped, tag = 'input window, operand 0']
    #allocation3 [shape = 's32[2]{0}', space=sflag, size = 0x8, scoped, tag = 'scoped memory for _pallas_linear.1']
    #allocation4 [shape = 's32[2]{0}', space=sflag, size = 0x8, scoped, tag = 'scoped memory for _pallas_linear.1']
    #allocation5 [shape = 'u8[589824]{0}', space=vmem, size = 0x90000, scoped, tag = 'input window, operand 1, single buffered']
    #allocation6 [shape = 's32[1]{0}', space=sflag, size = 0x4, scoped, tag = 'scoped memory for _pallas_linear.1']
    #allocation7 [shape = 'u8[221184]{0}', space=vmem, size = 0x36000, scoped, tag = 'output window, operand 0']
    %8 = vsyncpa [#allocation3], 0
    %s9 = scalar_lea.sflag [#allocation3], 1
    %10 = vsyncpa %s9, 0
    %11 = vsyncpa [#allocation6], 0
    %12 = vsyncpa [#allocation4], 0
    %s13 = scalar_lea.sflag [#allocation4], 1
    %14 = vsyncpa %s13, 0
    loop: start=0, step=1, limit=4
    $region2: #{_pallas_linear.1} parent=1 // loop_pre_header
      _
    $region3: #{_pallas_linear.1} parent=1 // loop_header
      %s16 = sphi 0, %s20
      %p17 = scmp.ge.s32.totalorder %s16, 4
      %s23 = sphi 0, %s42
      %s24 = sphi 0, %s38
      %s25 = sphi 0, %s34
      %s26 = sphi 0, %s23
      %s27 = sphi 0, %s24
      %s28 = sphi 0, %s25
      %s29 = sphi 0, %s26
      %s30 = sphi 0, %s27
      %s31 = sphi 0, %s28
      %s47 = sphi 0, %s49
      %s50 = sphi 0, %s47
      %s51 = sphi 0, %s50
      %s67 = sphi 0, %s51
      %s75 = sphi 0, %s77
      %s78 = sphi 0, %s75
      %s79 = sphi 0, %s78
      %s95 = sphi 0, %s79
      %s101 = sphi 0, %s103
      %s104 = sphi 0, %s101
      %s105 = sphi 0, %s104
      %s121 = sphi 0, %s105
      %s129 = sphi 0, %s131
      %s132 = sphi 0, %s129
      %s133 = sphi 0, %s132
      %s149 = sphi 0, %s133
    $region4: #{_pallas_linear.1} parent=1 // loop_header_branch
      %19 = sbr.rel (%p17) target = $region8
    $region5: #{_pallas_linear.1} parent=1 // loop_body
      %s21 = ssub.s32 %s16, 1
      %s22 = ssub.s32 %s16, 2
      %s32 = sadd.s32 1, %s25
      %p33 = scmp.ge.s32.totalorder %s32, 1
      %s34 = scalar_select %p33, 0, %s32
      %s35 = sadd.s32 1, %s24
      %s36 = scalar_select %p33, %s35, %s24
      %p37 = scmp.ge.s32.totalorder %s36, 1
      %s38 = scalar_select %p37, 0, %s36
      %s39 = sadd.s32 1, %s23
      %s40 = scalar_select %p37, %s39, %s23
      %p41 = scmp.ge.s32.totalorder %s40, 2
      %s42 = scalar_select %p41, 0, %s40
      %s43 = ssub.s32 %s23, %s42
      %s44 = ssub.s32 %s25, %s34
      %s45 = sor.u32 %s43, %s44
      %p46 = scmp.eq.s32.totalorder %s45, 0
      %s48 = sadd.s32 %s47, 1
      %s49 = scalar_select %p46, %s47, %s48
      %p52 = pneg %p46
      %p53 = scmp.eq.s32.totalorder %s16, 1
      %p54 = por %p52, %p53
      %p55 = scmp.ne.s32.totalorder %s47, %s50
      %p56 = scmp.eq.s32.totalorder %s16, 0
      %p57 = por %p55, %p56
      %p58 = scmp.ne.s32.totalorder %s47, %s50
      %p59 = scmp.eq.s32.totalorder %s21, 1
      %p60 = por %p58, %p59
      %p61 = scmp.ne.s32.totalorder %s50, %s51
      %p62 = scmp.eq.s32.totalorder %s21, 0
      %p63 = por %p61, %p62
      %p64 = scmp.ne.s32.totalorder %s50, %s51
      %p65 = scmp.eq.s32.totalorder %s22, 1
      %p66 = por %p64, %p65
      %p68 = scmp.ne.s32.totalorder %s51, %s67
      %p69 = scmp.eq.s32.totalorder %s22, 0
      %p70 = por %p68, %p69
      %s71 = ssub.s32 %s24, %s38
      %s72 = ssub.s32 %s25, %s34
      %s73 = sor.u32 %s71, %s72
      %p74 = scmp.eq.s32.totalorder %s73, 0
      %s76 = sadd.s32 %s75, 1
      %s77 = scalar_select %p74, %s75, %s76
      %p80 = pneg %p74
      %p81 = scmp.eq.s32.totalorder %s16, 1
      %p82 = por %p80, %p81
      %p83 = scmp.ne.s32.totalorder %s75, %s78
      %p84 = scmp.eq.s32.totalorder %s16, 0
      %p85 = por %p83, %p84
      %p86 = scmp.ne.s32.totalorder %s75, %s78
      %p87 = scmp.eq.s32.totalorder %s21, 1
      %p88 = por %p86, %p87
      %p89 = scmp.ne.s32.totalorder %s78, %s79
      %p90 = scmp.eq.s32.totalorder %s21, 0
      %p91 = por %p89, %p90
      %p92 = scmp.ne.s32.totalorder %s78, %s79
      %p93 = scmp.eq.s32.totalorder %s22, 1
      %p94 = por %p92, %p93
      %p96 = scmp.ne.s32.totalorder %s79, %s95
      %p97 = scmp.eq.s32.totalorder %s22, 0
      %p98 = por %p96, %p97
      %s99 = ssub.s32 %s24, %s38
      %p100 = scmp.eq.s32.totalorder %s99, 0
      %s102 = sadd.s32 %s101, 1
      %s103 = scalar_select %p100, %s101, %s102
      %p106 = pneg %p100
      %p107 = scmp.eq.s32.totalorder %s16, 1
      %p108 = por %p106, %p107
      %p109 = scmp.ne.s32.totalorder %s101, %s104
      %p110 = scmp.eq.s32.totalorder %s16, 0
      %p111 = por %p109, %p110
      %p112 = scmp.ne.s32.totalorder %s101, %s104
      %p113 = scmp.eq.s32.totalorder %s21, 1
      %p114 = por %p112, %p113
      %p115 = scmp.ne.s32.totalorder %s104, %s105
      %p116 = scmp.eq.s32.totalorder %s21, 0
      %p117 = por %p115, %p116
      %p118 = scmp.ne.s32.totalorder %s104, %s105
      %p119 = scmp.eq.s32.totalorder %s22, 1
      %p120 = por %p118, %p119
      %p122 = scmp.ne.s32.totalorder %s105, %s121
      %p123 = scmp.eq.s32.totalorder %s22, 0
      %p124 = por %p122, %p123
      %s125 = ssub.s32 %s23, %s42
      %s126 = ssub.s32 %s24, %s38
      %s127 = sor.u32 %s125, %s126
      %p128 = scmp.eq.s32.totalorder %s127, 0
      %s130 = sadd.s32 %s129, 1
      %s131 = scalar_select %p128, %s129, %s130
      %p134 = pneg %p128
      %p135 = scmp.eq.s32.totalorder %s16, 1
      %p136 = por %p134, %p135
      %p137 = scmp.ne.s32.totalorder %s129, %s132
      %p138 = scmp.eq.s32.totalorder %s16, 0
      %p139 = por %p137, %p138
      %p140 = scmp.ne.s32.totalorder %s129, %s132
      %p141 = scmp.eq.s32.totalorder %s21, 1
      %p142 = por %p140, %p141
      %p143 = scmp.ne.s32.totalorder %s132, %s133
      %p144 = scmp.eq.s32.totalorder %s21, 0
      %p145 = por %p143, %p144
      %p146 = scmp.ne.s32.totalorder %s132, %s133
      %p147 = scmp.eq.s32.totalorder %s22, 1
      %p148 = por %p146, %p147
      %p150 = scmp.ne.s32.totalorder %s133, %s149
      %p151 = scmp.eq.s32.totalorder %s22, 0
      %p152 = por %p150, %p151
      %p153 = scmp.le.s32.totalorder 1, %s16
      %p154 = scmp.lt.s32.totalorder %s16, 3
      %p155 = pnand %p153, %p154
      %p156 = pneg %p155
      // Predicated region
      $region9: #{_pallas_linear.1} parent=5 // pred_check
        _
      $region10: #{_pallas_linear.1} parent=5 // pred_check_branch
        %158 = sbr.rel (%p155) target = $region12
      $region11: #{_pallas_linear.1} parent=5 // pred_region
        %s159 = ssub.s32 %s16, 1
        // Predicated region
        $region13: #{_pallas_linear.1} parent=11 // pred_check
          %p160 = pneg %p91
        $region14: #{_pallas_linear.1} parent=11 // pred_check_branch
          %162 = sbr.rel (%p160) target = $region16
        $region15: #{_pallas_linear.1} parent=11 // pred_region
          %s163 = smul.u32 48, %s27
          %s164 = smul.u32 3, %s28
          %s166 = ssub.s32 18432, 18432
          %167 = vsyncadd [#allocation6], %s166
          %s168 = smul.addr %s163, 3
          %s169 = sadd.s32 %s164, %s168
          %s170 = smul.addr %s169, 128
          %s171 = scalar_lea.hbm %s1, %s170
          %s172 = sshll.u32 [#allocation5], 4
          %s173 = int_to_ptr.vmem [resolvable:$true] %s172
          %178 = dma.hbm_to_vmem [thread:$0]  %s171, 18432, %s173, [#allocation6], 384, 384, 24
        $region16: #{_pallas_linear.1} parent=11 // pred_fallthru
          _
        // Predicated region
        $region17: #{_pallas_linear.1} parent=11 // pred_check
          %p179 = pneg %p117
        $region18: #{_pallas_linear.1} parent=11 // pred_check_branch
          %181 = sbr.rel (%p179) target = $region20
        $region19: #{_pallas_linear.1} parent=11 // pred_region
          %s182 = smul.u32 3, %s27
          %p183 = scmp.lt.s32.totalorder %s182, 2
          %s184 = scalar_select %p183, %s182, 2
          %s185 = scalar_lea.vmem %s2, %s184
          %s186 = smul.u32 3, %s27
        $region20: #{_pallas_linear.1} parent=11 // pred_fallthru
          _
      $region12: #{_pallas_linear.1} parent=5 // pred_fallthru
        _
      %p187 = scmp.lt.s32.totalorder %s16, 2
      // Predicated region
      $region21: #{_pallas_linear.1} parent=5 // pred_check
        %p188 = pneg %p187
      $region22: #{_pallas_linear.1} parent=5 // pred_check_branch
        %190 = sbr.rel (%p188) target = $region24
      $region23: #{_pallas_linear.1} parent=5 // pred_region
        // Predicated region
        $region25: #{_pallas_linear.1} parent=23 // pred_check
          %p191 = pneg %p57
        $region26: #{_pallas_linear.1} parent=23 // pred_check_branch
          %193 = sbr.rel (%p191) target = $region28
        $region27: #{_pallas_linear.1} parent=23 // pred_region
          %s194 = sand.u32 %s47, 1
          %s195 = scalar_lea.sflag [#allocation3], %s194
          %s196 = sand.u32 %s47, 1
          %s197 = smul.addr %s196, 216
          %s198 = scalar_lea.vmem [#allocation2], %s197
          %s199 = smul.u32 9, %s23
          %s200 = smul.u32 3, %s25
          %s202 = ssub.s32 3456, 3456
          %203 = vsyncadd %s195, %s202
          %s204 = smul.addr %s199, 3
          %s205 = sadd.s32 %s200, %s204
          %s206 = smul.addr %s205, 128
          %s207 = scalar_lea.hbm %s0, %s206
          %s208 = sshll.u32 %s198, 4
          %s209 = int_to_ptr.vmem [resolvable:$true] %s208
          %214 = dma.hbm_to_vmem [thread:$0]  %s207, 3456, %s209, %s195, 384, 384, 24
        $region28: #{_pallas_linear.1} parent=23 // pred_fallthru
          _
      $region24: #{_pallas_linear.1} parent=5 // pred_fallthru
        _
      %p215 = scmp.le.s32.totalorder 1, %s16
      %p216 = scmp.lt.s32.totalorder %s16, 3
      %p217 = pnand %p215, %p216
      %p218 = pneg %p217
      // Predicated region
      $region29: #{_pallas_linear.1} parent=5 // pred_check
        _
      $region30: #{_pallas_linear.1} parent=5 // pred_check_branch
        %220 = sbr.rel (%p217) target = $region32
      $region31: #{_pallas_linear.1} parent=5 // pred_region
        %s221 = ssub.s32 %s16, 1
        %s222 = sand.u32 %s50, 1
        %s223 = scalar_lea.sflag [#allocation3], %s222
        %s224 = sand.u32 %s50, 1
        %s225 = smul.addr %s224, 216
        %s226 = scalar_lea.vmem [#allocation2], %s225
        // Predicated region
        $region33: #{_pallas_linear.1} parent=31 // pred_check
          %p227 = pneg %p63
        $region34: #{_pallas_linear.1} parent=31 // pred_check_branch
          %229 = sbr.rel (%p227) target = $region36
        $region35: #{_pallas_linear.1} parent=31 // pred_region
          %230 = dma.done %s223, 3456
        $region36: #{_pallas_linear.1} parent=31 // pred_fallthru
          _
        // Predicated region
        $region37: #{_pallas_linear.1} parent=31 // pred_check
          %p231 = pneg %p91
        $region38: #{_pallas_linear.1} parent=31 // pred_check_branch
          %233 = sbr.rel (%p231) target = $region40
        $region39: #{_pallas_linear.1} parent=31 // pred_region
          %234 = dma.done [#allocation6], 18432
        $region40: #{_pallas_linear.1} parent=31 // pred_fallthru
          _
        %s235 = sand.u32 %s50, 1
        %s236 = scalar_lea.sflag [#allocation3], %s235
        %s237 = sand.u32 %s50, 1
        %s238 = smul.addr %s237, 216
        %s239 = scalar_lea.vmem [#allocation2], %s238
        %p240 = pneg %p63
        %p241 = pneg %p60
        %p242 = pneg %p91
        %p243 = pneg %p88
        %s244 = smul.u32 3, %s27
        %p245 = scmp.lt.s32.totalorder %s244, 2
        %s246 = scalar_select %p245, %s244, 2
        %s247 = scalar_lea.vmem %s2, %s246
        %p248 = pneg %p117
        %p249 = pneg %p114
        %p250 = pneg %p145
        %p251 = pneg %p142
        %s252 = sand.u32 %s132, 1
        %s253 = scalar_lea.sflag [#allocation4], %s252
        %s254 = sand.u32 %s132, 1
        %s255 = smul.addr %s254, 216
        %s256 = scalar_lea.vmem [#allocation7], %s255
        %s257 = smul.u32 9, %s26
        %s258 = smul.u32 3, %s28
        %s259 = smul.u32 48, %s27
        %s260 = smul.u32 3, %s28
        %s261 = smul.u32 3, %s27
        %p262 = scmp.lt.s32.totalorder %s261, 2
        %s263 = scalar_select %p262, %s261, 2
        %s264 = scalar_lea.vmem %s2, %s263
        %s265 = smul.u32 3, %s27
        %s266 = smul.u32 9, %s26
        %s267 = smul.u32 3, %s27
        %p268 = scmp.eq.s32.totalorder %s28, 0
        // Predicated region
        $region41: #{_pallas_linear.1} parent=31 // pred_check
          %p269 = pneg %p268
        $region42: #{_pallas_linear.1} parent=31 // pred_check_branch
          %271 = sbr.rel (%p269) target = $region44
        $region43: #{_pallas_linear.1} parent=31 // pred_region
          %v272 = vld [vmem:[%s264] sm:$0x7]
          %v274 = vlaneseq
          %v275 = vshrl.u32 %v274, 7
          %v276 = vsub.s32 0, %v275
          %v277 = vrot.slane %v272, %v276
          %v278 = vlaneseq
          %v279 = vshrl.u32 %v278, 7
          %v280 = vsub.s32 1, %v279
          %v281 = vrot.slane %v272, %v280
          %v282 = vlaneseq
          %v283 = vshrl.u32 %v282, 7
          %v284 = vsub.s32 2, %v283
          %v285 = vrot.slane %v272, %v284
          %289 = vst [vmem:[%s256] sm:$0xff] %v277
          %290 = vst [vmem:[%s256 + $0x8] sm:$0xff] %v281
          %291 = vst [vmem:[%s256 + $0x10] sm:$0xff] %v285
          %292 = vst [vmem:[%s256 + $0x18] sm:$0xff] %v277
          %293 = vst [vmem:[%s256 + $0x20] sm:$0xff] %v281
          %294 = vst [vmem:[%s256 + $0x28] sm:$0xff] %v285
          %295 = vst [vmem:[%s256 + $0x30] sm:$0xff] %v277
          %296 = vst [vmem:[%s256 + $0x38] sm:$0xff] %v281
          %297 = vst [vmem:[%s256 + $0x40] sm:$0xff] %v285
          %298 = vst [vmem:[%s256 + $0x48] sm:$0xff] %v277
          %299 = vst [vmem:[%s256 + $0x50] sm:$0xff] %v281
          %300 = vst [vmem:[%s256 + $0x58] sm:$0xff] %v285
          %301 = vst [vmem:[%s256 + $0x60] sm:$0xff] %v277
          %302 = vst [vmem:[%s256 + $0x68] sm:$0xff] %v281
          %303 = vst [vmem:[%s256 + $0x70] sm:$0xff] %v285
          %304 = vst [vmem:[%s256 + $0x78] sm:$0xff] %v277
          %305 = vst [vmem:[%s256 + $0x80] sm:$0xff] %v281
          %306 = vst [vmem:[%s256 + $0x88] sm:$0xff] %v285
          %307 = vst [vmem:[%s256 + $0x90] sm:$0xff] %v277
          %308 = vst [vmem:[%s256 + $0x98] sm:$0xff] %v281
          %309 = vst [vmem:[%s256 + $0xa0] sm:$0xff] %v285
          %310 = vst [vmem:[%s256 + $0xa8] sm:$0xff] %v277
          %311 = vst [vmem:[%s256 + $0xb0] sm:$0xff] %v281
          %312 = vst [vmem:[%s256 + $0xb8] sm:$0xff] %v285
          %313 = vst [vmem:[%s256 + $0xc0] sm:$0xff] %v277
          %314 = vst [vmem:[%s256 + $0xc8] sm:$0xff] %v281
          %315 = vst [vmem:[%s256 + $0xd0] sm:$0xff] %v285
        $region44: #{_pallas_linear.1} parent=31 // pred_fallthru
          _
        %v316 = vld [vmem:[%s256] sm:$0xff]
        %v317 = vld [vmem:[%s256 + $0x8] sm:$0xff]
        %v318 = vld [vmem:[%s256 + $0x10] sm:$0xff]
        %v319 = vld [vmem:[%s256 + $0x18] sm:$0xff]
        %v320 = vld [vmem:[%s256 + $0x20] sm:$0xff]
        %v321 = vld [vmem:[%s256 + $0x28] sm:$0xff]
        %v322 = vld [vmem:[%s256 + $0x30] sm:$0xff]
        %v323 = vld [vmem:[%s256 + $0x38] sm:$0xff]
        %v324 = vld [vmem:[%s256 + $0x40] sm:$0xff]
        %v325 = vld [vmem:[%s256 + $0x48] sm:$0xff]
        %v326 = vld [vmem:[%s256 + $0x50] sm:$0xff]
        %v327 = vld [vmem:[%s256 + $0x58] sm:$0xff]
        %v328 = vld [vmem:[%s256 + $0x60] sm:$0xff]
        %v329 = vld [vmem:[%s256 + $0x68] sm:$0xff]
        %v330 = vld [vmem:[%s256 + $0x70] sm:$0xff]
        %v331 = vld [vmem:[%s256 + $0x78] sm:$0xff]
        %v332 = vld [vmem:[%s256 + $0x80] sm:$0xff]
        %v333 = vld [vmem:[%s256 + $0x88] sm:$0xff]
        %v334 = vld [vmem:[%s256 + $0x90] sm:$0xff]
        %v335 = vld [vmem:[%s256 + $0x98] sm:$0xff]
        %v336 = vld [vmem:[%s256 + $0xa0] sm:$0xff]
        %v337 = vld [vmem:[%s256 + $0xa8] sm:$0xff]
        %v338 = vld [vmem:[%s256 + $0xb0] sm:$0xff]
        %v339 = vld [vmem:[%s256 + $0xb8] sm:$0xff]
        %v340 = vld [vmem:[%s256 + $0xc0] sm:$0xff]
        %v341 = vld [vmem:[%s256 + $0xc8] sm:$0xff]
        %v342 = vld [vmem:[%s256 + $0xd0] sm:$0xff]
        %v343 = vld [vmem:[%s226] sm:$0xff]
        %v344 = vld [vmem:[%s226 + $0x8] sm:$0xff]
        %v345 = vld [vmem:[%s226 + $0x10] sm:$0xff]
        %v346 = vld [vmem:[%s226 + $0x18] sm:$0xff]
        %v347 = vld [vmem:[%s226 + $0x20] sm:$0xff]
        %v348 = vld [vmem:[%s226 + $0x28] sm:$0xff]
        %v349 = vld [vmem:[%s226 + $0x30] sm:$0xff]
        %v350 = vld [vmem:[%s226 + $0x38] sm:$0xff]
        %v351 = vld [vmem:[%s226 + $0x40] sm:$0xff]
        %v352 = vld [vmem:[%s226 + $0x48] sm:$0xff]
        %v353 = vld [vmem:[%s226 + $0x50] sm:$0xff]
        %v354 = vld [vmem:[%s226 + $0x58] sm:$0xff]
        %v355 = vld [vmem:[%s226 + $0x60] sm:$0xff]
        %v356 = vld [vmem:[%s226 + $0x68] sm:$0xff]
        %v357 = vld [vmem:[%s226 + $0x70] sm:$0xff]
        %v358 = vld [vmem:[%s226 + $0x78] sm:$0xff]
        %v359 = vld [vmem:[%s226 + $0x80] sm:$0xff]
        %v360 = vld [vmem:[%s226 + $0x88] sm:$0xff]
        %v361 = vld [vmem:[%s226 + $0x90] sm:$0xff]
        %v362 = vld [vmem:[%s226 + $0x98] sm:$0xff]
        %v363 = vld [vmem:[%s226 + $0xa0] sm:$0xff]
        %v364 = vld [vmem:[%s226 + $0xa8] sm:$0xff]
        %v365 = vld [vmem:[%s226 + $0xb0] sm:$0xff]
        %v366 = vld [vmem:[%s226 + $0xb8] sm:$0xff]
        %v367 = vld [vmem:[%s226 + $0xc0] sm:$0xff]
        %v368 = vld [vmem:[%s226 + $0xc8] sm:$0xff]
        %v369 = vld [vmem:[%s226 + $0xd0] sm:$0xff]
        %v370 = vld [vmem:[#allocation5] sm:$0xff]
        %v371 = vld [vmem:[#allocation5 + $0x8] sm:$0xff]
        %v372 = vld [vmem:[#allocation5 + $0x10] sm:$0xff]
        %v373 = vld [vmem:[#allocation5 + $0x18] sm:$0xff]
        %v374 = vld [vmem:[#allocation5 + $0x20] sm:$0xff]
        %v375 = vld [vmem:[#allocation5 + $0x28] sm:$0xff]
        %v376 = vld [vmem:[#allocation5 + $0x30] sm:$0xff]
        %v377 = vld [vmem:[#allocation5 + $0x38] sm:$0xff]
        %v378 = vld [vmem:[#allocation5 + $0x40] sm:$0xff]
        %v379 = vld [vmem:[#allocation5 + $0x48] sm:$0xff]
        %v380 = vld [vmem:[#allocation5 + $0x50] sm:$0xff]
        %v381 = vld [vmem:[#allocation5 + $0x58] sm:$0xff]
        %v382 = vld [vmem:[#allocation5 + $0x60] sm:$0xff]
        %v383 = vld [vmem:[#allocation5 + $0x68] sm:$0xff]
        %v384 = vld [vmem:[#allocation5 + $0x70] sm:$0xff]
        %v385 = vld [vmem:[#allocation5 + $0x78] sm:$0xff]
        %v386 = vld [vmem:[#allocation5 + $0x80] sm:$0xff]
        %v387 = vld [vmem:[#allocation5 + $0x88] sm:$0xff]
        %v388 = vld [vmem:[#allocation5 + $0x90] sm:$0xff]
        %v389 = vld [vmem:[#allocation5 + $0x98] sm:$0xff]
        %v390 = vld [vmem:[#allocation5 + $0xa0] sm:$0xff]
        %v391 = vld [vmem:[#allocation5 + $0xa8] sm:$0xff]
        %v392 = vld [vmem:[#allocation5 + $0xb0] sm:$0xff]
        %v393 = vld [vmem:[#allocation5 + $0xb8] sm:$0xff]
        %v394 = vld [vmem:[#allocation5 + $0xc0] sm:$0xff]
        %v395 = vld [vmem:[#allocation5 + $0xc8] sm:$0xff]
        %v396 = vld [vmem:[#allocation5 + $0xd0] sm:$0xff]
        %v397 = vld [vmem:[#allocation5 + $0xd8] sm:$0xff]
        %v398 = vld [vmem:[#allocation5 + $0xe0] sm:$0xff]
        %v399 = vld [vmem:[#allocation5 + $0xe8] sm:$0xff]
        %v400 = vld [vmem:[#allocation5 + $0xf0] sm:$0xff]
        %v401 = vld [vmem:[#allocation5 + $0xf8] sm:$0xff]
        %v402 = vld [vmem:[#allocation5 + $0x100] sm:$0xff]
        %v403 = vld [vmem:[#allocation5 + $0x108] sm:$0xff]
        %v404 = vld [vmem:[#allocation5 + $0x110] sm:$0xff]
        %v405 = vld [vmem:[#allocation5 + $0x118] sm:$0xff]
        %v406 = vld [vmem:[#allocation5 + $0x120] sm:$0xff]
        %v407 = vld [vmem:[#allocation5 + $0x128] sm:$0xff]
        %v408 = vld [vmem:[#allocation5 + $0x130] sm:$0xff]
        %v409 = vld [vmem:[#allocation5 + $0x138] sm:$0xff]
        %v410 = vld [vmem:[#allocation5 + $0x140] sm:$0xff]
        %v411 = vld [vmem:[#allocation5 + $0x148] sm:$0xff]
        %v412 = vld [vmem:[#allocation5 + $0x150] sm:$0xff]
        %v413 = vld [vmem:[#allocation5 + $0x158] sm:$0xff]
        %v414 = vld [vmem:[#allocation5 + $0x160] sm:$0xff]
        %v415 = vld [vmem:[#allocation5 + $0x168] sm:$0xff]
        %v416 = vld [vmem:[#allocation5 + $0x170] sm:$0xff]
        %v417 = vld [vmem:[#allocation5 + $0x178] sm:$0xff]
        %v418 = vld [vmem:[#allocation5 + $0x180] sm:$0xff]
        %v419 = vld [vmem:[#allocation5 + $0x188] sm:$0xff]
        %v420 = vld [vmem:[#allocation5 + $0x190] sm:$0xff]
        %v421 = vld [vmem:[#allocation5 + $0x198] sm:$0xff]
        %v422 = vld [vmem:[#allocation5 + $0x1a0] sm:$0xff]
        %v423 = vld [vmem:[#allocation5 + $0x1a8] sm:$0xff]
        %v424 = vld [vmem:[#allocation5 + $0x1b0] sm:$0xff]
        %v425 = vld [vmem:[#allocation5 + $0x1b8] sm:$0xff]
        %v426 = vld [vmem:[#allocation5 + $0x1c0] sm:$0xff]
        %v427 = vld [vmem:[#allocation5 + $0x1c8] sm:$0xff]
        %v428 = vld [vmem:[#allocation5 + $0x1d0] sm:$0xff]
        %v429 = vld [vmem:[#allocation5 + $0x1d8] sm:$0xff]
        %v430 = vld [vmem:[#allocation5 + $0x1e0] sm:$0xff]
        %v431 = vld [vmem:[#allocation5 + $0x1e8] sm:$0xff]
        %v432 = vld [vmem:[#allocation5 + $0x1f0] sm:$0xff]
        %v433 = vld [vmem:[#allocation5 + $0x1f8] sm:$0xff]
        %v434 = vld [vmem:[#allocation5 + $0x200] sm:$0xff]
        %v435 = vld [vmem:[#allocation5 + $0x208] sm:$0xff]
        %v436 = vld [vmem:[#allocation5 + $0x210] sm:$0xff]
        %v437 = vld [vmem:[#allocation5 + $0x218] sm:$0xff]
        %v438 = vld [vmem:[#allocation5 + $0x220] sm:$0xff]
        %v439 = vld [vmem:[#allocation5 + $0x228] sm:$0xff]
        %v440 = vld [vmem:[#allocation5 + $0x230] sm:$0xff]
        %v441 = vld [vmem:[#allocation5 + $0x238] sm:$0xff]
        %v442 = vld [vmem:[#allocation5 + $0x240] sm:$0xff]
        %v443 = vld [vmem:[#allocation5 + $0x248] sm:$0xff]
        %v444 = vld [vmem:[#allocation5 + $0x250] sm:$0xff]
        %v445 = vld [vmem:[#allocation5 + $0x258] sm:$0xff]
        %v446 = vld [vmem:[#allocation5 + $0x260] sm:$0xff]
        %v447 = vld [vmem:[#allocation5 + $0x268] sm:$0xff]
        %v448 = vld [vmem:[#allocation5 + $0x270] sm:$0xff]
        %v449 = vld [vmem:[#allocation5 + $0x278] sm:$0xff]
        %v450 = vld [vmem:[#allocation5 + $0x280] sm:$0xff]
        %v451 = vld [vmem:[#allocation5 + $0x288] sm:$0xff]
        %v452 = vld [vmem:[#allocation5 + $0x290] sm:$0xff]
        %v453 = vld [vmem:[#allocation5 + $0x298] sm:$0xff]
        %v454 = vld [vmem:[#allocation5 + $0x2a0] sm:$0xff]
        %v455 = vld [vmem:[#allocation5 + $0x2a8] sm:$0xff]
        %v456 = vld [vmem:[#allocation5 + $0x2b0] sm:$0xff]
        %v457 = vld [vmem:[#allocation5 + $0x2b8] sm:$0xff]
        %v458 = vld [vmem:[#allocation5 + $0x2c0] sm:$0xff]
        %v459 = vld [vmem:[#allocation5 + $0x2c8] sm:$0xff]
        %v460 = vld [vmem:[#allocation5 + $0x2d0] sm:$0xff]
        %v461 = vld [vmem:[#allocation5 + $0x2d8] sm:$0xff]
        %v462 = vld [vmem:[#allocation5 + $0x2e0] sm:$0xff]
        %v463 = vld [vmem:[#allocation5 + $0x2e8] sm:$0xff]
        %v464 = vld [vmem:[#allocation5 + $0x2f0] sm:$0xff]
        %v465 = vld [vmem:[#allocation5 + $0x2f8] sm:$0xff]
        %v466 = vld [vmem:[#allocation5 + $0x300] sm:$0xff]
        %v467 = vld [vmem:[#allocation5 + $0x308] sm:$0xff]
        %v468 = vld [vmem:[#allocation5 + $0x310] sm:$0xff]
        %v469 = vld [vmem:[#allocation5 + $0x318] sm:$0xff]
        %v470 = vld [vmem:[#allocation5 + $0x320] sm:$0xff]
        %v471 = vld [vmem:[#allocation5 + $0x328] sm:$0xff]
        %v472 = vld [vmem:[#allocation5 + $0x330] sm:$0xff]
        %v473 = vld [vmem:[#allocation5 + $0x338] sm:$0xff]
        %v474 = vld [vmem:[#allocation5 + $0x340] sm:$0xff]
        %v475 = vld [vmem:[#allocation5 + $0x348] sm:$0xff]
        %v476 = vld [vmem:[#allocation5 + $0x350] sm:$0xff]
        %v477 = vld [vmem:[#allocation5 + $0x358] sm:$0xff]
        %v478 = vld [vmem:[#allocation5 + $0x360] sm:$0xff]
        %v479 = vld [vmem:[#allocation5 + $0x368] sm:$0xff]
        %v480 = vld [vmem:[#allocation5 + $0x370] sm:$0xff]
        %v481 = vld [vmem:[#allocation5 + $0x378] sm:$0xff]
        %v482 = vld [vmem:[#allocation5 + $0x380] sm:$0xff]
        %v483 = vld [vmem:[#allocation5 + $0x388] sm:$0xff]
        %v484 = vld [vmem:[#allocation5 + $0x390] sm:$0xff]
        %v485 = vld [vmem:[#allocation5 + $0x398] sm:$0xff]
        %v486 = vld [vmem:[#allocation5 + $0x3a0] sm:$0xff]
        %v487 = vld [vmem:[#allocation5 + $0x3a8] sm:$0xff]
        %v488 = vld [vmem:[#allocation5 + $0x3b0] sm:$0xff]
        %v489 = vld [vmem:[#allocation5 + $0x3b8] sm:$0xff]
        %v490 = vld [vmem:[#allocation5 + $0x3c0] sm:$0xff]
        %v491 = vld [vmem:[#allocation5 + $0x3c8] sm:$0xff]
        %v492 = vld [vmem:[#allocation5 + $0x3d0] sm:$0xff]
        %v493 = vld [vmem:[#allocation5 + $0x3d8] sm:$0xff]
        %v494 = vld [vmem:[#allocation5 + $0x3e0] sm:$0xff]
        %v495 = vld [vmem:[#allocation5 + $0x3e8] sm:$0xff]
        %v496 = vld [vmem:[#allocation5 + $0x3f0] sm:$0xff]
        %v497 = vld [vmem:[#allocation5 + $0x3f8] sm:$0xff]
        %v498 = vld [vmem:[#allocation5 + $0x400] sm:$0xff]
        %v499 = vld [vmem:[#allocation5 + $0x408] sm:$0xff]
        %v500 = vld [vmem:[#allocation5 + $0x410] sm:$0xff]
        %v501 = vld [vmem:[#allocation5 + $0x418] sm:$0xff]
        %v502 = vld [vmem:[#allocation5 + $0x420] sm:$0xff]
        %v503 = vld [vmem:[#allocation5 + $0x428] sm:$0xff]
        %v504 = vld [vmem:[#allocation5 + $0x430] sm:$0xff]
        %v505 = vld [vmem:[#allocation5 + $0x438] sm:$0xff]
        %v506 = vld [vmem:[#allocation5 + $0x440] sm:$0xff]
        %v507 = vld [vmem:[#allocation5 + $0x448] sm:$0xff]
        %v508 = vld [vmem:[#allocation5 + $0x450] sm:$0xff]
        %v509 = vld [vmem:[#allocation5 + $0x458] sm:$0xff]
        %v510 = vld [vmem:[#allocation5 + $0x460] sm:$0xff]
        %v511 = vld [vmem:[#allocation5 + $0x468] sm:$0xff]
        %v512 = vld [vmem:[#allocation5 + $0x470] sm:$0xff]
        %v513 = vld [vmem:[#allocation5 + $0x478] sm:$0xff]
        %514 = vmatprep.subr.mxu0 %v416
        %515 = vmatpush1.xpose.msra.mxu0 %v415
        %516 = vmatprep.subr.mxu0 %v413
        %517 = vmatpush1.xpose.msra.mxu0 %v412
        %518 = vmatprep.subr.mxu0 %v410
        %519 = vmatpush1.xpose.msra.mxu0 %v409
        %520 = vmatprep.subr.mxu0 %v407
        %521 = vmatpush1.xpose.msra.mxu0 %v406
        %522 = vmatprep.subr.mxu0 %v404
        %523 = vmatpush1.xpose.msra.mxu0 %v403
        %524 = vmatprep.subr.mxu0 %v401
        %525 = vmatpush1.xpose.msra.mxu0 %v400
        %526 = vmatprep.subr.mxu0 %v398
        %527 = vmatpush1.xpose.msra.mxu0 %v397
        %528 = vmatprep.subr.mxu0 %v395
        %529 = vmatpush1.xpose.msra.mxu0 %v394
        %530 = vmatprep.subr.mxu0 %v392
        %531 = vmatpush1.xpose.msra.mxu0 %v391
        %532 = vmatprep.subr.mxu0 %v389
        %533 = vmatpush1.xpose.msra.mxu0 %v388
        %534 = vmatprep.subr.mxu0 %v386
        %535 = vmatpush1.xpose.msra.mxu0 %v385
        %536 = vmatprep.subr.mxu0 %v383
        %537 = vmatpush1.xpose.msra.mxu0 %v382
        %538 = vmatprep.subr.mxu0 %v380
        %539 = vmatpush1.xpose.msra.mxu0 %v379
        %540 = vmatprep.subr.mxu0 %v377
        %541 = vmatpush1.xpose.msra.mxu0 %v376
        %542 = vmatprep.subr.mxu0 %v374
        %543 = vmatpush1.xpose.msra.mxu0 %v373
        %544 = vmatprep.subr.mxu0 %v371
        %545 = vmatpush1.xpose.msra.mxu0 %v370
        %546 = vmatprep.subr.mxu0 %v464
        %547 = vmatpush2.xpose.msra.mxu0 %v463
        %548 = vmatprep.subr.mxu0 %v461
        %549 = vmatpush2.xpose.msra.mxu0 %v460
        %550 = vmatprep.subr.mxu0 %v458
        %551 = vmatpush2.xpose.msra.mxu0 %v457
        %552 = vmatprep.subr.mxu0 %v455
        %553 = vmatpush2.xpose.msra.mxu0 %v454
        %554 = vmatprep.subr.mxu0 %v452
        %555 = vmatpush2.xpose.msra.mxu0 %v451
        %556 = vmatprep.subr.mxu0 %v449
        %557 = vmatpush2.xpose.msra.mxu0 %v448
        %558 = vmatprep.subr.mxu0 %v446
        %559 = vmatpush2.xpose.msra.mxu0 %v445
        %560 = vmatprep.subr.mxu0 %v443
        %561 = vmatpush2.xpose.msra.mxu0 %v442
        %562 = vmatprep.subr.mxu0 %v440
        %563 = vmatpush2.xpose.msra.mxu0 %v439
        %564 = vmatprep.subr.mxu0 %v437
        %565 = vmatpush2.xpose.msra.mxu0 %v436
        %566 = vmatprep.subr.mxu0 %v434
        %567 = vmatpush2.xpose.msra.mxu0 %v433
        %568 = vmatprep.subr.mxu0 %v431
        %569 = vmatpush2.xpose.msra.mxu0 %v430
        %570 = vmatprep.subr.mxu0 %v428
        %571 = vmatpush2.xpose.msra.mxu0 %v427
        %572 = vmatprep.subr.mxu0 %v425
        %573 = vmatpush2.xpose.msra.mxu0 %v424
        %574 = vmatprep.subr.mxu0 %v422
        %575 = vmatpush2.xpose.msra.mxu0 %v421
        %576 = vmatprep.subr.mxu0 %v419
        %577 = vmatpush2.xpose.msra.mxu0 %v418
        %578 = vmatprep.mubr.f32.mxu0 %v344
        %579 = vmatmul.mubr.f32.gmra.mxu0 %v343
        %v580 = vpop.f32.mrf.mxu0
        %v581 = vadd.f32 0.0, %v580
        %v582 = vpop.f32.mrf.mxu0
        %v583 = vadd.f32 0.0, %v582
        %584 = vmatprep.mubr.f32.mxu0 %v347
        %585 = vmatmul.mubr.f32.gmra.mxu0 %v346
        %v586 = vpop.f32.mrf.mxu0
        %v587 = vadd.f32 0.0, %v586
        %v588 = vpop.f32.mrf.mxu0
        %v589 = vadd.f32 0.0, %v588
        %590 = vmatprep.mubr.f32.mxu0 %v350
        %591 = vmatmul.mubr.f32.gmra.mxu0 %v349
        %v592 = vpop.f32.mrf.mxu0
        %v593 = vadd.f32 0.0, %v592
        %v594 = vpop.f32.mrf.mxu0
        %v595 = vadd.f32 0.0, %v594
        %596 = vmatprep.mubr.f32.mxu0 %v353
        %597 = vmatmul.mubr.f32.gmra.mxu0 %v352
        %v598 = vpop.f32.mrf.mxu0
        %v599 = vadd.f32 0.0, %v598
        %v600 = vpop.f32.mrf.mxu0
        %v601 = vadd.f32 0.0, %v600
        %602 = vmatprep.mubr.f32.mxu0 %v356
        %603 = vmatmul.mubr.f32.gmra.mxu0 %v355
        %v604 = vpop.f32.mrf.mxu0
        %v605 = vadd.f32 0.0, %v604
        %v606 = vpop.f32.mrf.mxu0
        %v607 = vadd.f32 0.0, %v606
        %608 = vmatprep.mubr.f32.mxu0 %v359
        %609 = vmatmul.mubr.f32.gmra.mxu0 %v358
        %v610 = vpop.f32.mrf.mxu0
        %v611 = vadd.f32 0.0, %v610
        %v612 = vpop.f32.mrf.mxu0
        %v613 = vadd.f32 0.0, %v612
        %614 = vmatprep.mubr.f32.mxu0 %v362
        %615 = vmatmul.mubr.f32.gmra.mxu0 %v361
        %v616 = vpop.f32.mrf.mxu0
        %v617 = vadd.f32 0.0, %v616
        %v618 = vpop.f32.mrf.mxu0
        %v619 = vadd.f32 0.0, %v618
        %620 = vmatprep.mubr.f32.mxu0 %v365
        %621 = vmatmul.mubr.f32.gmra.mxu0 %v364
        %v622 = vpop.f32.mrf.mxu0
        %v623 = vadd.f32 0.0, %v622
        %v624 = vpop.f32.mrf.mxu0
        %v625 = vadd.f32 0.0, %v624
        %626 = vmatprep.mubr.f32.mxu0 %v368
        %627 = vmatmul.mubr.f32.gmra.mxu0 %v367
        %v628 = vpop.f32.mrf.mxu0
        %v629 = vadd.f32 0.0, %v628
        %v630 = vpop.f32.mrf.mxu0
        %v631 = vadd.f32 0.0, %v630
        %632 = vdwg.mxu0
        %633 = vmatprep.subr.mxu0 0.0
        %634 = vmatpush1.xpose.msra.mxu0 %v417
        %635 = vmatprep.subr.mxu0 0.0
        %636 = vmatpush1.xpose.msra.mxu0 %v414
        %637 = vmatprep.subr.mxu0 0.0
        %638 = vmatpush1.xpose.msra.mxu0 %v411
        %639 = vmatprep.subr.mxu0 0.0
        %640 = vmatpush1.xpose.msra.mxu0 %v408
        %641 = vmatprep.subr.mxu0 0.0
        %642 = vmatpush1.xpose.msra.mxu0 %v405
        %643 = vmatprep.subr.mxu0 0.0
        %644 = vmatpush1.xpose.msra.mxu0 %v402
        %645 = vmatprep.subr.mxu0 0.0
        %646 = vmatpush1.xpose.msra.mxu0 %v399
        %647 = vmatprep.subr.mxu0 0.0
        %648 = vmatpush1.xpose.msra.mxu0 %v396
        %649 = vmatprep.subr.mxu0 0.0
        %650 = vmatpush1.xpose.msra.mxu0 %v393
        %651 = vmatprep.subr.mxu0 0.0
        %652 = vmatpush1.xpose.msra.mxu0 %v390
        %653 = vmatprep.subr.mxu0 0.0
        %654 = vmatpush1.xpose.msra.mxu0 %v387
        %655 = vmatprep.subr.mxu0 0.0
        %656 = vmatpush1.xpose.msra.mxu0 %v384
        %657 = vmatprep.subr.mxu0 0.0
        %658 = vmatpush1.xpose.msra.mxu0 %v381
        %659 = vmatprep.subr.mxu0 0.0
        %660 = vmatpush1.xpose.msra.mxu0 %v378
        %661 = vmatprep.subr.mxu0 0.0
        %662 = vmatpush1.xpose.msra.mxu0 %v375
        %663 = vmatprep.subr.mxu0 0.0
        %664 = vmatpush1.xpose.msra.mxu0 %v372
        %665 = vmatprep.subr.mxu0 0.0
        %666 = vmatpush2.xpose.msra.mxu0 %v465
        %667 = vmatprep.subr.mxu0 0.0
        %668 = vmatpush2.xpose.msra.mxu0 %v462
        %669 = vmatprep.subr.mxu0 0.0
        %670 = vmatpush2.xpose.msra.mxu0 %v459
        %671 = vmatprep.subr.mxu0 0.0
        %672 = vmatpush2.xpose.msra.mxu0 %v456
        %673 = vmatprep.subr.mxu0 0.0
        %674 = vmatpush2.xpose.msra.mxu0 %v453
        %675 = vmatprep.subr.mxu0 0.0
        %676 = vmatpush2.xpose.msra.mxu0 %v450
        %677 = vmatprep.subr.mxu0 0.0
        %678 = vmatpush2.xpose.msra.mxu0 %v447
        %679 = vmatprep.subr.mxu0 0.0
        %680 = vmatpush2.xpose.msra.mxu0 %v444
        %681 = vmatprep.subr.mxu0 0.0
        %682 = vmatpush2.xpose.msra.mxu0 %v441
        %683 = vmatprep.subr.mxu0 0.0
        %684 = vmatpush2.xpose.msra.mxu0 %v438
        %685 = vmatprep.subr.mxu0 0.0
        %686 = vmatpush2.xpose.msra.mxu0 %v435
        %687 = vmatprep.subr.mxu0 0.0
        %688 = vmatpush2.xpose.msra.mxu0 %v432
        %689 = vmatprep.subr.mxu0 0.0
        %690 = vmatpush2.xpose.msra.mxu0 %v429
        %691 = vmatprep.subr.mxu0 0.0
        %692 = vmatpush2.xpose.msra.mxu0 %v426
        %693 = vmatprep.subr.mxu0 0.0
        %694 = vmatpush2.xpose.msra.mxu0 %v423
        %695 = vmatprep.subr.mxu0 0.0
        %696 = vmatpush2.xpose.msra.mxu0 %v420
        %697 = vmatprep.mubr.f32.mxu0 0.0
        %698 = vmatmul.mubr.f32.gmra.mxu0 %v345
        %v699 = vpop.f32.mrf.mxu0
        %v700 = vadd.f32 %v581, %v699
        %v701 = vpop.f32.mrf.mxu0
        %v702 = vadd.f32 %v583, %v701
        %703 = vmatprep.mubr.f32.mxu0 0.0
        %704 = vmatmul.mubr.f32.gmra.mxu0 %v348
        %v705 = vpop.f32.mrf.mxu0
        %v706 = vadd.f32 %v587, %v705
        %v707 = vpop.f32.mrf.mxu0
        %v708 = vadd.f32 %v589, %v707
        %709 = vmatprep.mubr.f32.mxu0 0.0
        %710 = vmatmul.mubr.f32.gmra.mxu0 %v351
        %v711 = vpop.f32.mrf.mxu0
        %v712 = vadd.f32 %v593, %v711
        %v713 = vpop.f32.mrf.mxu0
        %v714 = vadd.f32 %v595, %v713
        %715 = vmatprep.mubr.f32.mxu0 0.0
        %716 = vmatmul.mubr.f32.gmra.mxu0 %v354
        %v717 = vpop.f32.mrf.mxu0
        %v718 = vadd.f32 %v599, %v717
        %v719 = vpop.f32.mrf.mxu0
        %v720 = vadd.f32 %v601, %v719
        %721 = vmatprep.mubr.f32.mxu0 0.0
        %722 = vmatmul.mubr.f32.gmra.mxu0 %v357
        %v723 = vpop.f32.mrf.mxu0
        %v724 = vadd.f32 %v605, %v723
        %v725 = vpop.f32.mrf.mxu0
        %v726 = vadd.f32 %v607, %v725
        %727 = vmatprep.mubr.f32.mxu0 0.0
        %728 = vmatmul.mubr.f32.gmra.mxu0 %v360
        %v729 = vpop.f32.mrf.mxu0
        %v730 = vadd.f32 %v611, %v729
        %v731 = vpop.f32.mrf.mxu0
        %v732 = vadd.f32 %v613, %v731
        %733 = vmatprep.mubr.f32.mxu0 0.0
        %734 = vmatmul.mubr.f32.gmra.mxu0 %v363
        %v735 = vpop.f32.mrf.mxu0
        %v736 = vadd.f32 %v617, %v735
        %v737 = vpop.f32.mrf.mxu0
        %v738 = vadd.f32 %v619, %v737
        %739 = vmatprep.mubr.f32.mxu0 0.0
        %740 = vmatmul.mubr.f32.gmra.mxu0 %v366
        %v741 = vpop.f32.mrf.mxu0
        %v742 = vadd.f32 %v623, %v741
        %v743 = vpop.f32.mrf.mxu0
        %v744 = vadd.f32 %v625, %v743
        %745 = vmatprep.mubr.f32.mxu0 0.0
        %746 = vmatmul.mubr.f32.gmra.mxu0 %v369
        %v747 = vpop.f32.mrf.mxu0
        %v748 = vadd.f32 %v629, %v747
        %v749 = vpop.f32.mrf.mxu0
        %v750 = vadd.f32 %v631, %v749
        %751 = vdwg.mxu0
        %752 = vmatprep.subr.mxu0 %v512
        %753 = vmatpush1.xpose.msra.mxu0 %v511
        %754 = vmatprep.subr.mxu0 %v509
        %755 = vmatpush1.xpose.msra.mxu0 %v508
        %756 = vmatprep.subr.mxu0 %v506
        %757 = vmatpush1.xpose.msra.mxu0 %v505
        %758 = vmatprep.subr.mxu0 %v503
        %759 = vmatpush1.xpose.msra.mxu0 %v502
        %760 = vmatprep.subr.mxu0 %v500
        %761 = vmatpush1.xpose.msra.mxu0 %v499
        %762 = vmatprep.subr.mxu0 %v497
        %763 = vmatpush1.xpose.msra.mxu0 %v496
        %764 = vmatprep.subr.mxu0 %v494
        %765 = vmatpush1.xpose.msra.mxu0 %v493
        %766 = vmatprep.subr.mxu0 %v491
        %767 = vmatpush1.xpose.msra.mxu0 %v490
        %768 = vmatprep.subr.mxu0 %v488
        %769 = vmatpush1.xpose.msra.mxu0 %v487
        %770 = vmatprep.subr.mxu0 %v485
        %771 = vmatpush1.xpose.msra.mxu0 %v484
        %772 = vmatprep.subr.mxu0 %v482
        %773 = vmatpush1.xpose.msra.mxu0 %v481
        %774 = vmatprep.subr.mxu0 %v479
        %775 = vmatpush1.xpose.msra.mxu0 %v478
        %776 = vmatprep.subr.mxu0 %v476
        %777 = vmatpush1.xpose.msra.mxu0 %v475
        %778 = vmatprep.subr.mxu0 %v473
        %779 = vmatpush1.xpose.msra.mxu0 %v472
        %780 = vmatprep.subr.mxu0 %v470
        %781 = vmatpush1.xpose.msra.mxu0 %v469
        %782 = vmatprep.subr.mxu0 %v467
        %783 = vmatpush1.xpose.msra.mxu0 %v466
        %784 = vmatprep.subr.mxu0 0.0
        %785 = vmatpush2.xpose.msra.mxu0 0.0
        %786 = vmatprep.subr.mxu0 0.0
        %787 = vmatpush2.xpose.msra.mxu0 0.0
        %788 = vmatprep.subr.mxu0 0.0
        %789 = vmatpush2.xpose.msra.mxu0 0.0
        %790 = vmatprep.subr.mxu0 0.0
        %791 = vmatpush2.xpose.msra.mxu0 0.0
        %792 = vmatprep.subr.mxu0 0.0
        %793 = vmatpush2.xpose.msra.mxu0 0.0
        %794 = vmatprep.subr.mxu0 0.0
        %795 = vmatpush2.xpose.msra.mxu0 0.0
        %796 = vmatprep.subr.mxu0 0.0
        %797 = vmatpush2.xpose.msra.mxu0 0.0
        %798 = vmatprep.subr.mxu0 0.0
        %799 = vmatpush2.xpose.msra.mxu0 0.0
        %800 = vmatprep.subr.mxu0 0.0
        %801 = vmatpush2.xpose.msra.mxu0 0.0
        %802 = vmatprep.subr.mxu0 0.0
        %803 = vmatpush2.xpose.msra.mxu0 0.0
        %804 = vmatprep.subr.mxu0 0.0
        %805 = vmatpush2.xpose.msra.mxu0 0.0
        %806 = vmatprep.subr.mxu0 0.0
        %807 = vmatpush2.xpose.msra.mxu0 0.0
        %808 = vmatprep.subr.mxu0 0.0
        %809 = vmatpush2.xpose.msra.mxu0 0.0
        %810 = vmatprep.subr.mxu0 0.0
        %811 = vmatpush2.xpose.msra.mxu0 0.0
        %812 = vmatprep.subr.mxu0 0.0
        %813 = vmatpush2.xpose.msra.mxu0 0.0
        %814 = vmatprep.subr.mxu0 0.0
        %815 = vmatpush2.xpose.msra.mxu0 0.0
        %816 = vmatprep.mubr.f32.mxu0 %v344
        %817 = vmatmul.mubr.f32.gmra.mxu0 %v343
        %v818 = vpop.f32.mrf.mxu0
        %v819 = vadd.f32 0.0, %v818
        %v820 = vpop.f32.mrf.mxu0
        %821 = vmatprep.mubr.f32.mxu0 %v347
        %822 = vmatmul.mubr.f32.gmra.mxu0 %v346
        %v823 = vpop.f32.mrf.mxu0
        %v824 = vadd.f32 0.0, %v823
        %v825 = vpop.f32.mrf.mxu0
        %826 = vmatprep.mubr.f32.mxu0 %v350
        %827 = vmatmul.mubr.f32.gmra.mxu0 %v349
        %v828 = vpop.f32.mrf.mxu0
        %v829 = vadd.f32 0.0, %v828
        %v830 = vpop.f32.mrf.mxu0
        %831 = vmatprep.mubr.f32.mxu0 %v353
        %832 = vmatmul.mubr.f32.gmra.mxu0 %v352
        %v833 = vpop.f32.mrf.mxu0
        %v834 = vadd.f32 0.0, %v833
        %v835 = vpop.f32.mrf.mxu0
        %836 = vmatprep.mubr.f32.mxu0 %v356
        %837 = vmatmul.mubr.f32.gmra.mxu0 %v355
        %v838 = vpop.f32.mrf.mxu0
        %v839 = vadd.f32 0.0, %v838
        %v840 = vpop.f32.mrf.mxu0
        %841 = vmatprep.mubr.f32.mxu0 %v359
        %842 = vmatmul.mubr.f32.gmra.mxu0 %v358
        %v843 = vpop.f32.mrf.mxu0
        %v844 = vadd.f32 0.0, %v843
        %v845 = vpop.f32.mrf.mxu0
        %846 = vmatprep.mubr.f32.mxu0 %v362
        %847 = vmatmul.mubr.f32.gmra.mxu0 %v361
        %v848 = vpop.f32.mrf.mxu0
        %v849 = vadd.f32 0.0, %v848
        %v850 = vpop.f32.mrf.mxu0
        %851 = vmatprep.mubr.f32.mxu0 %v365
        %852 = vmatmul.mubr.f32.gmra.mxu0 %v364
        %v853 = vpop.f32.mrf.mxu0
        %v854 = vadd.f32 0.0, %v853
        %v855 = vpop.f32.mrf.mxu0
        %856 = vmatprep.mubr.f32.mxu0 %v368
        %857 = vmatmul.mubr.f32.gmra.mxu0 %v367
        %v858 = vpop.f32.mrf.mxu0
        %v859 = vadd.f32 0.0, %v858
        %v860 = vpop.f32.mrf.mxu0
        %861 = vdwg.mxu0
        %862 = vmatprep.subr.mxu0 0.0
        %863 = vmatpush1.xpose.msra.mxu0 %v513
        %864 = vmatprep.subr.mxu0 0.0
        %865 = vmatpush1.xpose.msra.mxu0 %v510
        %866 = vmatprep.subr.mxu0 0.0
        %867 = vmatpush1.xpose.msra.mxu0 %v507
        %868 = vmatprep.subr.mxu0 0.0
        %869 = vmatpush1.xpose.msra.mxu0 %v504
        %870 = vmatprep.subr.mxu0 0.0
        %871 = vmatpush1.xpose.msra.mxu0 %v501
        %872 = vmatprep.subr.mxu0 0.0
        %873 = vmatpush1.xpose.msra.mxu0 %v498
        %874 = vmatprep.subr.mxu0 0.0
        %875 = vmatpush1.xpose.msra.mxu0 %v495
        %876 = vmatprep.subr.mxu0 0.0
        %877 = vmatpush1.xpose.msra.mxu0 %v492
        %878 = vmatprep.subr.mxu0 0.0
        %879 = vmatpush1.xpose.msra.mxu0 %v489
        %880 = vmatprep.subr.mxu0 0.0
        %881 = vmatpush1.xpose.msra.mxu0 %v486
        %882 = vmatprep.subr.mxu0 0.0
        %883 = vmatpush1.xpose.msra.mxu0 %v483
        %884 = vmatprep.subr.mxu0 0.0
        %885 = vmatpush1.xpose.msra.mxu0 %v480
        %886 = vmatprep.subr.mxu0 0.0
        %887 = vmatpush1.xpose.msra.mxu0 %v477
        %888 = vmatprep.subr.mxu0 0.0
        %889 = vmatpush1.xpose.msra.mxu0 %v474
        %890 = vmatprep.subr.mxu0 0.0
        %891 = vmatpush1.xpose.msra.mxu0 %v471
        %892 = vmatprep.subr.mxu0 0.0
        %893 = vmatpush1.xpose.msra.mxu0 %v468
        %894 = vmatprep.subr.mxu0 0.0
        %895 = vmatpush2.xpose.msra.mxu0 0.0
        %896 = vmatprep.subr.mxu0 0.0
        %897 = vmatpush2.xpose.msra.mxu0 0.0
        %898 = vmatprep.subr.mxu0 0.0
        %899 = vmatpush2.xpose.msra.mxu0 0.0
        %900 = vmatprep.subr.mxu0 0.0
        %901 = vmatpush2.xpose.msra.mxu0 0.0
        %902 = vmatprep.subr.mxu0 0.0
        %903 = vmatpush2.xpose.msra.mxu0 0.0
        %904 = vmatprep.subr.mxu0 0.0
        %905 = vmatpush2.xpose.msra.mxu0 0.0
        %906 = vmatprep.subr.mxu0 0.0
        %907 = vmatpush2.xpose.msra.mxu0 0.0
        %908 = vmatprep.subr.mxu0 0.0
        %909 = vmatpush2.xpose.msra.mxu0 0.0
        %910 = vmatprep.subr.mxu0 0.0
        %911 = vmatpush2.xpose.msra.mxu0 0.0
        %912 = vmatprep.subr.mxu0 0.0
        %913 = vmatpush2.xpose.msra.mxu0 0.0
        %914 = vmatprep.subr.mxu0 0.0
        %915 = vmatpush2.xpose.msra.mxu0 0.0
        %916 = vmatprep.subr.mxu0 0.0
        %917 = vmatpush2.xpose.msra.mxu0 0.0
        %918 = vmatprep.subr.mxu0 0.0
        %919 = vmatpush2.xpose.msra.mxu0 0.0
        %920 = vmatprep.subr.mxu0 0.0
        %921 = vmatpush2.xpose.msra.mxu0 0.0
        %922 = vmatprep.subr.mxu0 0.0
        %923 = vmatpush2.xpose.msra.mxu0 0.0
        %924 = vmatprep.subr.mxu0 0.0
        %925 = vmatpush2.xpose.msra.mxu0 0.0
        %926 = vmatprep.mubr.f32.mxu0 0.0
        %927 = vmatmul.mubr.f32.gmra.mxu0 %v345
        %v928 = vpop.f32.mrf.mxu0
        %v929 = vadd.f32 %v819, %v928
        %v930 = vpop.f32.mrf.mxu0
        %931 = vmatprep.mubr.f32.mxu0 0.0
        %932 = vmatmul.mubr.f32.gmra.mxu0 %v348
        %v933 = vpop.f32.mrf.mxu0
        %v934 = vadd.f32 %v824, %v933
        %v935 = vpop.f32.mrf.mxu0
        %936 = vmatprep.mubr.f32.mxu0 0.0
        %937 = vmatmul.mubr.f32.gmra.mxu0 %v351
        %v938 = vpop.f32.mrf.mxu0
        %v939 = vadd.f32 %v829, %v938
        %v940 = vpop.f32.mrf.mxu0
        %941 = vmatprep.mubr.f32.mxu0 0.0
        %942 = vmatmul.mubr.f32.gmra.mxu0 %v354
        %v943 = vpop.f32.mrf.mxu0
        %v944 = vadd.f32 %v834, %v943
        %v945 = vpop.f32.mrf.mxu0
        %946 = vmatprep.mubr.f32.mxu0 0.0
        %947 = vmatmul.mubr.f32.gmra.mxu0 %v357
        %v948 = vpop.f32.mrf.mxu0
        %v949 = vadd.f32 %v839, %v948
        %v950 = vpop.f32.mrf.mxu0
        %951 = vmatprep.mubr.f32.mxu0 0.0
        %952 = vmatmul.mubr.f32.gmra.mxu0 %v360
        %v953 = vpop.f32.mrf.mxu0
        %v954 = vadd.f32 %v844, %v953
        %v955 = vpop.f32.mrf.mxu0
        %956 = vmatprep.mubr.f32.mxu0 0.0
        %957 = vmatmul.mubr.f32.gmra.mxu0 %v363
        %v958 = vpop.f32.mrf.mxu0
        %v959 = vadd.f32 %v849, %v958
        %v960 = vpop.f32.mrf.mxu0
        %961 = vmatprep.mubr.f32.mxu0 0.0
        %962 = vmatmul.mubr.f32.gmra.mxu0 %v366
        %v963 = vpop.f32.mrf.mxu0
        %v964 = vadd.f32 %v854, %v963
        %v965 = vpop.f32.mrf.mxu0
        %966 = vmatprep.mubr.f32.mxu0 0.0
        %967 = vmatmul.mubr.f32.gmra.mxu0 %v369
        %v968 = vpop.f32.mrf.mxu0
        %v969 = vadd.f32 %v859, %v968
        %v970 = vpop.f32.mrf.mxu0
        %971 = vdwg.mxu0
        %v972 = vadd.f32 %v316, %v700
        %v973 = vadd.f32 %v317, %v702
        %v974 = vadd.f32 %v318, %v929
        %v975 = vadd.f32 %v319, %v706
        %v976 = vadd.f32 %v320, %v708
        %v977 = vadd.f32 %v321, %v934
        %v978 = vadd.f32 %v322, %v712
        %v979 = vadd.f32 %v323, %v714
        %v980 = vadd.f32 %v324, %v939
        %v981 = vadd.f32 %v325, %v718
        %v982 = vadd.f32 %v326, %v720
        %v983 = vadd.f32 %v327, %v944
        %v984 = vadd.f32 %v328, %v724
        %v985 = vadd.f32 %v329, %v726
        %v986 = vadd.f32 %v330, %v949
        %v987 = vadd.f32 %v331, %v730
        %v988 = vadd.f32 %v332, %v732
        %v989 = vadd.f32 %v333, %v954
        %v990 = vadd.f32 %v334, %v736
        %v991 = vadd.f32 %v335, %v738
        %v992 = vadd.f32 %v336, %v959
        %v993 = vadd.f32 %v337, %v742
        %v994 = vadd.f32 %v338, %v744
        %v995 = vadd.f32 %v339, %v964
        %v996 = vadd.f32 %v340, %v748
        %v997 = vadd.f32 %v341, %v750
        %v998 = vadd.f32 %v342, %v969
        %999 = vst [vmem:[%s256] sm:$0xff] %v972
        %1000 = vst [vmem:[%s256 + $0x8] sm:$0xff] %v973
        %1001 = vst [vmem:[%s256 + $0x10] sm:$0xff] %v974
        %1002 = vst [vmem:[%s256 + $0x18] sm:$0xff] %v975
        %1003 = vst [vmem:[%s256 + $0x20] sm:$0xff] %v976
        %1004 = vst [vmem:[%s256 + $0x28] sm:$0xff] %v977
        %1005 = vst [vmem:[%s256 + $0x30] sm:$0xff] %v978
        %1006 = vst [vmem:[%s256 + $0x38] sm:$0xff] %v979
        %1007 = vst [vmem:[%s256 + $0x40] sm:$0xff] %v980
        %1008 = vst [vmem:[%s256 + $0x48] sm:$0xff] %v981
        %1009 = vst [vmem:[%s256 + $0x50] sm:$0xff] %v982
        %1010 = vst [vmem:[%s256 + $0x58] sm:$0xff] %v983
        %1011 = vst [vmem:[%s256 + $0x60] sm:$0xff] %v984
        %1012 = vst [vmem:[%s256 + $0x68] sm:$0xff] %v985
        %1013 = vst [vmem:[%s256 + $0x70] sm:$0xff] %v986
        %1014 = vst [vmem:[%s256 + $0x78] sm:$0xff] %v987
        %1015 = vst [vmem:[%s256 + $0x80] sm:$0xff] %v988
        %1016 = vst [vmem:[%s256 + $0x88] sm:$0xff] %v989
        %1017 = vst [vmem:[%s256 + $0x90] sm:$0xff] %v990
        %1018 = vst [vmem:[%s256 + $0x98] sm:$0xff] %v991
        %1019 = vst [vmem:[%s256 + $0xa0] sm:$0xff] %v992
        %1020 = vst [vmem:[%s256 + $0xa8] sm:$0xff] %v993
        %1021 = vst [vmem:[%s256 + $0xb0] sm:$0xff] %v994
        %1022 = vst [vmem:[%s256 + $0xb8] sm:$0xff] %v995
        %1023 = vst [vmem:[%s256 + $0xc0] sm:$0xff] %v996
        %1024 = vst [vmem:[%s256 + $0xc8] sm:$0xff] %v997
        %1025 = vst [vmem:[%s256 + $0xd0] sm:$0xff] %v998
        %s1026 = sand.u32 %s132, 1
        %s1027 = scalar_lea.sflag [#allocation4], %s1026
        %s1028 = sand.u32 %s132, 1
        %s1029 = smul.addr %s1028, 216
        %s1030 = scalar_lea.vmem [#allocation7], %s1029
        // Predicated region
        $region45: #{_pallas_linear.1} parent=31 // pred_check
          %p1031 = pneg %p142
        $region46: #{_pallas_linear.1} parent=31 // pred_check_branch
          %1033 = sbr.rel (%p1031) target = $region48
        $region47: #{_pallas_linear.1} parent=31 // pred_region
          %s1034 = smul.u32 9, %s26
          %s1035 = smul.u32 3, %s27
          %s1037 = ssub.s32 3456, 3456
          %1038 = vsyncadd %s1027, %s1037
          %s1039 = smul.addr %s1034, 3
          %s1040 = sadd.s32 %s1035, %s1039
          %s1041 = smul.addr %s1040, 128
          %s1042 = scalar_lea.hbm %s3, %s1041
          %s1043 = sshll.u32 %s1030, 4
          %s1044 = int_to_ptr.vmem [resolvable:$true] %s1043
          %1049 = dma.vmem_to_hbm [thread:$0]  %s1044, 3456, %s1042, %s1027, 384, 384, 24
        $region48: #{_pallas_linear.1} parent=31 // pred_fallthru
          _
      $region32: #{_pallas_linear.1} parent=5 // pred_fallthru
        _
      %p1050 = scmp.le.s32.totalorder 2, %s16
      // Predicated region
      $region49: #{_pallas_linear.1} parent=5 // pred_check
        %p1051 = pneg %p1050
      $region50: #{_pallas_linear.1} parent=5 // pred_check_branch
        %1053 = sbr.rel (%p1051) target = $region52
      $region51: #{_pallas_linear.1} parent=5 // pred_region
        %s1054 = ssub.s32 %s16, 2
        // Predicated region
        $region53: #{_pallas_linear.1} parent=51 // pred_check
          %p1055 = pneg %p148
        $region54: #{_pallas_linear.1} parent=51 // pred_check_branch
          %1057 = sbr.rel (%p1055) target = $region56
        $region55: #{_pallas_linear.1} parent=51 // pred_region
          %s1058 = sand.u32 %s133, 1
          %s1059 = scalar_lea.sflag [#allocation4], %s1058
          %s1060 = sand.u32 %s133, 1
          %s1061 = smul.addr %s1060, 216
          %s1062 = scalar_lea.vmem [#allocation7], %s1061
          %1063 = dma.done %s1059, 3456
        $region56: #{_pallas_linear.1} parent=51 // pred_fallthru
          _
      $region52: #{_pallas_linear.1} parent=5 // pred_fallthru
        _
    $region6: #{_pallas_linear.1} parent=1 // loop_footer
      %s20 = sadd.s32 1, %s16
    $region7: #{_pallas_linear.1} parent=1 // loop_footer_branch
      %15 = sbr.rel target = $region3
    $region8: #{_pallas_linear.1} parent=1 // loop_exit
      _
    %1064 = vsyncpa [#allocation3], 1
    %s1065 = scalar_lea.sflag [#allocation3], 1
    %1066 = vsyncpa %s1065, 1
    %1067 = vsyncpa [#allocation6], 1
    %1068 = vsyncpa [#allocation4], 1
    %s1069 = scalar_lea.sflag [#allocation4], 1
    %1070 = vsyncpa %s1069, 1

</llo_original>
